<compile_context>
chip_gen: v5e
topology: v5e:2x2
jax: 0.10.0
libtpu: 0.0.40
codegen_flags: <defaults>
</compile_context>

<pallas_src>
import functools

import jax
import jax.numpy as jnp
from jax import lax
from jax.experimental import pallas as pl
from jax.experimental.pallas import tpu as pltpu


def _round_up(n: int, m: int) -> int:
    return ((n + m - 1) // m) * m


def _mlp_kernel(x_ref, w1_ref, b1_ref, w2_ref, b2_ref, w3_ref, b3_ref, o_ref):
    """Fused 3-layer MLP on one batch tile.

    x_ref:  (TB, F_in)  VMEM   (TB multiple of 128)
    w1_ref: (F_in, H)   VMEM
    b1_ref: (1, H)      VMEM
    w2_ref: (H, H)      VMEM
    b2_ref: (1, H)      VMEM
    w3_ref: (1, H)      VMEM   (third-layer weight stored as a row)
    b3_ref: (1, 1)      VMEM
    o_ref:  (1, TB)     VMEM   (lane-dense output row)
    """
    x = x_ref[...]

    # Layer 1: Linear + ReLU  (Dropout == identity in eval mode)
    h1 = jnp.dot(x, w1_ref[...], preferred_element_type=jnp.float32) + b1_ref[...]
    h1 = jnp.maximum(h1, 0.0)

    # Layer 2: Linear + ReLU  (Dropout == identity in eval mode)
    h2 = jnp.dot(h1, w2_ref[...], preferred_element_type=jnp.float32) + b2_ref[...]
    h2 = jnp.maximum(h2, 0.0)

    # Layer 3: contract w3 (1, H) with h2 (TB, H) over H -> (1, TB).
    # Produces the per-example scalars as a lane-dense row (no N=1 degenerate
    # matmul, no masked width-1 stores).
    out_row = lax.dot_general(
        w3_ref[...], h2,
        dimension_numbers=(((1,), (1,)), ((), ())),
        preferred_element_type=jnp.float32,
    )
    o_ref[...] = out_row + b3_ref[...]


@functools.partial(jax.jit, static_argnames=("batch_tile",))
def regression_simple_mlp(x, params, batch_tile=512):
    """Forward pass. x: (B, in_features) float32. Returns (B,) float32."""
    w1, b1, w2, b2, w3, b3 = params
    B, F_in = x.shape
    H = w1.shape[1]

    x = x.astype(jnp.float32)
    w1 = w1.astype(jnp.float32)
    w2 = w2.astype(jnp.float32)
    b1 = b1.reshape(1, H).astype(jnp.float32)
    b2 = b2.reshape(1, H).astype(jnp.float32)
    w3r = w3.reshape(1, H).astype(jnp.float32)   # (H, 1) -> (1, H) row
    b3r = b3.reshape(1, 1).astype(jnp.float32)

    # Batch tile: multiple of 128 (lane-dense output row, f32 sublane-aligned
    # x rows), clamped so tiny batches don't over-pad.
    tb = max(128, min(_round_up(batch_tile, 128), _round_up(B, 128)))
    b_pad = _round_up(B, tb)
    num_tiles = b_pad // tb
    if b_pad != B:
        x = jnp.pad(x, ((0, b_pad - B), (0, 0)))

    out_row = pl.pallas_call(
        _mlp_kernel,
        out_shape=jax.ShapeDtypeStruct((1, b_pad), jnp.float32),
        grid_spec=pltpu.PrefetchScalarGridSpec(
            num_scalar_prefetch=0,
            grid=(num_tiles,),
            in_specs=[
                pl.BlockSpec((tb, F_in), lambda i: (i, 0)),   # x tile (streams)
                pl.BlockSpec((F_in, H), lambda i: (0, 0)),    # w1 (resident)
                pl.BlockSpec((1, H), lambda i: (0, 0)),       # b1
                pl.BlockSpec((H, H), lambda i: (0, 0)),       # w2 (resident)
                pl.BlockSpec((1, H), lambda i: (0, 0)),       # b2
                pl.BlockSpec((1, H), lambda i: (0, 0)),       # w3 row
                pl.BlockSpec((1, 1), lambda i: (0, 0)),       # b3
            ],
            out_specs=pl.BlockSpec((1, tb), lambda i: (0, i)),  # lane-dense row
        ),
        compiler_params=pltpu.CompilerParams(
            dimension_semantics=("parallel",),
            # Actual VMEM footprint is ~100 KB at tb=512 (weights ~6 KB + two
            # double-buffered x tiles); 32 MiB is explicit and safe everywhere.
            vmem_limit_bytes=32 * 1024 * 1024,
        ),
    )(x, w1, b1, w2, b2, w3r, b3r)

    # .reshape(-1) from the PyTorch module; drop padded rows.
    return out_row.reshape(-1)[:B]


def init_params(key, in_features, hidden_features):
    """Deterministic init mimicking torch.nn.Linear (uniform(+-1/sqrt(fan_in))).

    Weights are stored transposed: (fan_in, fan_out) so the kernel computes x @ W.
    """
    k = jax.random.split(key, 6)

    def lin(kw, kb, fan_in, fan_out):
        bound = 1.0 / jnp.sqrt(fan_in)
        w = jax.random.uniform(kw, (fan_in, fan_out), jnp.float32, -bound, bound)
        b = jax.random.uniform(kb, (fan_out,), jnp.float32, -bound, bound)
        return w, b

    w1, b1 = lin(k[0], k[1], in_features, hidden_features)
    w2, b2 = lin(k[2], k[3], hidden_features, hidden_features)
    w3, b3 = lin(k[4], k[5], hidden_features, 1)
    return (w1, b1, w2, b2, w3, b3)


def _reference(x, params):
    """Pure-JAX reference for correctness check (eval-mode dropout = identity)."""
    w1, b1, w2, b2, w3, b3 = params
    h1 = jnp.maximum(x @ w1 + b1, 0.0)
    h2 = jnp.maximum(h1 @ w2 + b2, 0.0)
    return (h2 @ w3 + b3).reshape(-1)


if __name__ == "__main__":
    key = jax.random.PRNGKey(0)
    k_x, k_x2, k_p = jax.random.split(key, 3)

    in_features = 16
    hidden_features = 32
    dropout = 0.1  # identity at inference

    params = init_params(k_p, in_features, hidden_features)

    # Small demo batch consistent with the module (exercises the padding path:
    # 8 rows -> one 128-row tile).
    batch = 8
    x = jax.random.normal(k_x, (batch, in_features), dtype=jnp.float32)
    out = jax.block_until_ready(regression_simple_mlp(x, params))
    ref = _reference(x, params)
    assert out.shape == (batch,), out.shape
    assert jnp.allclose(out, ref, atol=1e-4, rtol=1e-4), (out, ref)

    # Ragged multi-tile case: batch not a multiple of the tile, grid of 3
    # programs with batch_tile=128 (exercises the streaming / megacore path).
    batch2 = 300
    x2 = jax.random.normal(k_x2, (batch2, in_features), dtype=jnp.float32)
    out2 = jax.block_until_ready(regression_simple_mlp(x2, params, batch_tile=128))
    ref2 = _reference(x2, params)
    assert out2.shape == (batch2,), out2.shape
    assert jnp.allclose(out2, ref2, atol=1e-4, rtol=1e-4), (out2, ref2)

    print("KERNEL_OK")
</pallas_src>

<mosaic_0001>
module attributes {stable_mosaic.version = 11 : i64} {
  func.func @_mlp_kernel(%arg0: i32, %arg1: memref<128x16xf32, #tpu.memory_space<vmem>>, %arg2: memref<16x32xf32, #tpu.memory_space<vmem>>, %arg3: memref<1x32xf32, #tpu.memory_space<vmem>>, %arg4: memref<32x32xf32, #tpu.memory_space<vmem>>, %arg5: memref<1x32xf32, #tpu.memory_space<vmem>>, %arg6: memref<1x32xf32, #tpu.memory_space<vmem>>, %arg7: memref<1x1xf32, #tpu.memory_space<vmem>>, %arg8: memref<1x128xf32, #tpu.memory_space<vmem>>) attributes {dimension_semantics = [#tpu.dimension_semantics<parallel>], iteration_bounds = array<i64: 1>, scalar_prefetch = 0 : i64, scratch_operands = 0 : i64, tpu.core_type = #tpu.core_type<tc>, window_params = [{transform_indices = @transform_0, window_bounds = array<i64: 128, 16>}, {pipeline_mode = #tpu.pipeline_mode<synchronous>, transform_indices = @transform_1, window_bounds = array<i64: 16, 32>}, {pipeline_mode = #tpu.pipeline_mode<synchronous>, transform_indices = @transform_2, window_bounds = array<i64: 1, 32>}, {pipeline_mode = #tpu.pipeline_mode<synchronous>, transform_indices = @transform_3, window_bounds = array<i64: 32, 32>}, {pipeline_mode = #tpu.pipeline_mode<synchronous>, transform_indices = @transform_4, window_bounds = array<i64: 1, 32>}, {pipeline_mode = #tpu.pipeline_mode<synchronous>, transform_indices = @transform_5, window_bounds = array<i64: 1, 32>}, {pipeline_mode = #tpu.pipeline_mode<synchronous>, transform_indices = @transform_6, window_bounds = array<i64: 1, 1>}, {transform_indices = @transform_7, window_bounds = array<i64: 1, 128>}]} {
    %c0 = arith.constant 0 : index
    %c0_0 = arith.constant 0 : index
    %0 = vector.load %arg1[%c0, %c0_0] : memref<128x16xf32, #tpu.memory_space<vmem>>, vector<128x16xf32>
    %c0_1 = arith.constant 0 : index
    %c0_2 = arith.constant 0 : index
    %1 = vector.load %arg2[%c0_1, %c0_2] : memref<16x32xf32, #tpu.memory_space<vmem>>, vector<16x32xf32>
    %cst = arith.constant dense<0.000000e+00> : vector<128x32xf32>
    %2 = tpu.matmul %0, %1, %cst {dimension_numbers = #tpu.dot_dimension_numbers<[1], [0], [0], [1], [0, 0, 1, 1], [], []>} : vector<128x16xf32>, vector<16x32xf32>, vector<128x32xf32> -> vector<128x32xf32>
    %c0_3 = arith.constant 0 : index
    %c0_4 = arith.constant 0 : index
    %3 = vector.load %arg3[%c0_3, %c0_4] : memref<1x32xf32, #tpu.memory_space<vmem>>, vector<1x32xf32>
    %4 = vector.broadcast %3 : vector<1x32xf32> to vector<128x32xf32>
    %5 = arith.addf %2, %4 : vector<128x32xf32>
    %cst_5 = arith.constant 0.000000e+00 : f32
    %6 = vector.broadcast %cst_5 : f32 to vector<128x32xf32>
    %7 = arith.maximumf %5, %6 : vector<128x32xf32>
    %c0_6 = arith.constant 0 : index
    %c0_7 = arith.constant 0 : index
    %8 = vector.load %arg4[%c0_6, %c0_7] : memref<32x32xf32, #tpu.memory_space<vmem>>, vector<32x32xf32>
    %cst_8 = arith.constant dense<0.000000e+00> : vector<128x32xf32>
    %9 = tpu.matmul %7, %8, %cst_8 {dimension_numbers = #tpu.dot_dimension_numbers<[1], [0], [0], [1], [0, 0, 1, 1], [], []>} : vector<128x32xf32>, vector<32x32xf32>, vector<128x32xf32> -> vector<128x32xf32>
    %c0_9 = arith.constant 0 : index
    %c0_10 = arith.constant 0 : index
    %10 = vector.load %arg5[%c0_9, %c0_10] : memref<1x32xf32, #tpu.memory_space<vmem>>, vector<1x32xf32>
    %11 = vector.broadcast %10 : vector<1x32xf32> to vector<128x32xf32>
    %12 = arith.addf %9, %11 : vector<128x32xf32>
    %cst_11 = arith.constant 0.000000e+00 : f32
    %13 = vector.broadcast %cst_11 : f32 to vector<128x32xf32>
    %14 = arith.maximumf %12, %13 : vector<128x32xf32>
    %c0_12 = arith.constant 0 : index
    %c0_13 = arith.constant 0 : index
    %15 = vector.load %arg6[%c0_12, %c0_13] : memref<1x32xf32, #tpu.memory_space<vmem>>, vector<1x32xf32>
    %cst_14 = arith.constant dense<0.000000e+00> : vector<1x128xf32>
    %16 = tpu.matmul %15, %14, %cst_14 {dimension_numbers = #tpu.dot_dimension_numbers<[1], [1], [0], [0], [0, 0, 1, 0], [], []>} : vector<1x32xf32>, vector<128x32xf32>, vector<1x128xf32> -> vector<1x128xf32>
    %c0_15 = arith.constant 0 : index
    %c0_16 = arith.constant 0 : index
    %17 = vector.load %arg7[%c0_15, %c0_16] : memref<1x1xf32, #tpu.memory_space<vmem>>, vector<1x1xf32>
    %18 = vector.broadcast %17 : vector<1x1xf32> to vector<1x128xf32>
    %19 = arith.addf %16, %18 : vector<1x128xf32>
    %c0_17 = arith.constant 0 : index
    %c0_18 = arith.constant 0 : index
    %20 = vector.load %arg8[%c0_17, %c0_18] : memref<1x128xf32, #tpu.memory_space<vmem>>, vector<1x128xf32>
    tpu.vector_store %arg8[%c0_17, %c0_18], %19 {strides = array<i32>} : memref<1x128xf32, #tpu.memory_space<vmem>>, vector<1x128xf32>,
    return
  }
  func.func @transform_0(%arg0: i32) -> (i32, i32) {
    %c0_i32 = arith.constant 0 : i32
    %c0_i32_0 = arith.constant 0 : i32
    return %arg0, %c0_i32 : i32, i32
  }
  func.func @transform_1(%arg0: i32) -> (i32, i32) {
    %c0_i32 = arith.constant 0 : i32
    %c0_i32_0 = arith.constant 0 : i32
    %c0_i32_1 = arith.constant 0 : i32
    return %c0_i32, %c0_i32_0 : i32, i32
  }
  func.func @transform_2(%arg0: i32) -> (i32, i32) {
    %c0_i32 = arith.constant 0 : i32
    %c0_i32_0 = arith.constant 0 : i32
    %c0_i32_1 = arith.constant 0 : i32
    return %c0_i32, %c0_i32_0 : i32, i32
  }
  func.func @transform_3(%arg0: i32) -> (i32, i32) {
    %c0_i32 = arith.constant 0 : i32
    %c0_i32_0 = arith.constant 0 : i32
    %c0_i32_1 = arith.constant 0 : i32
    return %c0_i32, %c0_i32_0 : i32, i32
  }
  func.func @transform_4(%arg0: i32) -> (i32, i32) {
    %c0_i32 = arith.constant 0 : i32
    %c0_i32_0 = arith.constant 0 : i32
    %c0_i32_1 = arith.constant 0 : i32
    return %c0_i32, %c0_i32_0 : i32, i32
  }
  func.func @transform_5(%arg0: i32) -> (i32, i32) {
    %c0_i32 = arith.constant 0 : i32
    %c0_i32_0 = arith.constant 0 : i32
    %c0_i32_1 = arith.constant 0 : i32
    return %c0_i32, %c0_i32_0 : i32, i32
  }
  func.func @transform_6(%arg0: i32) -> (i32, i32) {
    %c0_i32 = arith.constant 0 : i32
    %c0_i32_0 = arith.constant 0 : i32
    %c0_i32_1 = arith.constant 0 : i32
    return %c0_i32, %c0_i32_0 : i32, i32
  }
  func.func @transform_7(%arg0: i32) -> (i32, i32) {
    %c0_i32 = arith.constant 0 : i32
    %c0_i32_0 = arith.constant 0 : i32
    return %c0_i32, %arg0 : i32, i32
  }
}

</mosaic_0001>

<llo_original>
// kernel: regression_simple_mlp.1
$region0: #{regression_simple_mlp.1}
  #allocation0 [shape = 'u32[]', space=smem, size = 0x4, offset = 0x4, fixed_abs, tag = 'smem constant byte address 0x4 - core index']
  #allocation1 [shape = 'u32[72,128]{1,0:T(1,128)}', space=vmem, size = 0x9000, scoped, tag = 'internal scratch']
  #allocation2 [shape = 'f32[1,1]{1,0:T(1,128)S(1)}', space=vmem, size = 0x200, scoped, tag = 'scoped memory for regression_simple_mlp.1']
  %s0 = inlined_call_operand.vmem [shape: f32[128,16], index: 0, kind: input, shape index: {}]
  %s1 = inlined_call_operand.vmem [shape: f32[16,32], index: 1, kind: input, shape index: {}]
  %s2 = inlined_call_operand.vmem [shape: f32[1,32], index: 2, kind: input, shape index: {}]
  %s3 = inlined_call_operand.vmem [shape: f32[32,32], index: 3, kind: input, shape index: {}]
  %s4 = inlined_call_operand.vmem [shape: f32[1,32], index: 4, kind: input, shape index: {}]
  %s5 = inlined_call_operand.vmem [shape: f32[1,32], index: 5, kind: input, shape index: {}]
  %s6 = inlined_call_operand.<no memory space> [shape: f32[1,1], index: 6, kind: input, shape index: {}]
  %s7 = inlined_call_operand.vmem [shape: f32[1,128], index: 7, kind: output, shape index: {}]
  %s8 = sld [smem:[#allocation0]]
  $region38: #{regression_simple_mlp.1} parent=0
    _
  %s10 = ssub.s32 1, %s8
  %s11 = scalar_select 0, %s10, %s8
  %v12 = vstv %s6
  %13 = vst [vmem:[#allocation2] sm:$0x1] %v12
  // Predicated region
  $region2: #{regression_simple_mlp.1} parent=0 // pred_check
    _
  $region3: #{regression_simple_mlp.1} parent=0 // pred_check_branch
    %15 = sbr.rel (0) target = $region5
  $region4: #{regression_simple_mlp.1} parent=0 // pred_region
    _
  $region5: #{regression_simple_mlp.1} parent=0 // pred_fallthru
    _
  // Predicated region
  $region6: #{regression_simple_mlp.1} parent=0 // pred_check
    _
  $region7: #{regression_simple_mlp.1} parent=0 // pred_check_branch
    %17 = sbr.rel (0) target = $region9
  $region8: #{regression_simple_mlp.1} parent=0 // pred_region
    _
  $region9: #{regression_simple_mlp.1} parent=0 // pred_fallthru
    _
  // Predicated region
  $region10: #{regression_simple_mlp.1} parent=0 // pred_check
    _
  $region11: #{regression_simple_mlp.1} parent=0 // pred_check_branch
    %19 = sbr.rel (0) target = $region13
  $region12: #{regression_simple_mlp.1} parent=0 // pred_region
    _
  $region13: #{regression_simple_mlp.1} parent=0 // pred_fallthru
    _
  // Predicated region
  $region14: #{regression_simple_mlp.1} parent=0 // pred_check
    _
  $region15: #{regression_simple_mlp.1} parent=0 // pred_check_branch
    %21 = sbr.rel (0) target = $region17
  $region16: #{regression_simple_mlp.1} parent=0 // pred_region
    _
  $region17: #{regression_simple_mlp.1} parent=0 // pred_fallthru
    _
  // Predicated region
  $region18: #{regression_simple_mlp.1} parent=0 // pred_check
    _
  $region19: #{regression_simple_mlp.1} parent=0 // pred_check_branch
    %23 = sbr.rel (0) target = $region21
  $region20: #{regression_simple_mlp.1} parent=0 // pred_region
    _
  $region21: #{regression_simple_mlp.1} parent=0 // pred_fallthru
    _
  // Predicated region
  $region22: #{regression_simple_mlp.1} parent=0 // pred_check
    _
  $region23: #{regression_simple_mlp.1} parent=0 // pred_check_branch
    %25 = sbr.rel (0) target = $region25
  $region24: #{regression_simple_mlp.1} parent=0 // pred_region
    _
  $region25: #{regression_simple_mlp.1} parent=0 // pred_fallthru
    _
  // Predicated region
  $region26: #{regression_simple_mlp.1} parent=0 // pred_check
    _
  $region27: #{regression_simple_mlp.1} parent=0 // pred_check_branch
    %27 = sbr.rel (0) target = $region29
  $region28: #{regression_simple_mlp.1} parent=0 // pred_region
    _
  $region29: #{regression_simple_mlp.1} parent=0 // pred_fallthru
    _
  %v28 = vld [vmem:[%s0] sm:$0xff]
  %v29 = vld [vmem:[%s0 + $0x8] sm:$0xff]
  %v30 = vld [vmem:[%s0 + $0x10] sm:$0xff]
  %v31 = vld [vmem:[%s0 + $0x18] sm:$0xff]
  %v32 = vld [vmem:[%s0 + $0x20] sm:$0xff]
  %v33 = vld [vmem:[%s0 + $0x28] sm:$0xff]
  %v34 = vld [vmem:[%s0 + $0x30] sm:$0xff]
  %v35 = vld [vmem:[%s0 + $0x38] sm:$0xff]
  %v36 = vld [vmem:[%s0 + $0x40] sm:$0xff]
  %v37 = vld [vmem:[%s0 + $0x48] sm:$0xff]
  %v38 = vld [vmem:[%s0 + $0x50] sm:$0xff]
  %v39 = vld [vmem:[%s0 + $0x58] sm:$0xff]
  %v40 = vld [vmem:[%s0 + $0x60] sm:$0xff]
  %v41 = vld [vmem:[%s0 + $0x68] sm:$0xff]
  %v42 = vld [vmem:[%s0 + $0x70] sm:$0xff]
  %v43 = vld [vmem:[%s0 + $0x78] sm:$0xff]
  %v44 = vld [vmem:[%s1] sm:$0xff]
  %v45 = vld [vmem:[%s1 + $0x8] sm:$0xff]
  %v46 = vld [vmem:[%s2] sm:$0x1]
  %v48 = vperm.slane %v46, 0
  %vm50 = vcmask 130048
  %v52 = vsel %vm50, %v28, 0
  %v55 = vsel %vm50, %v29, 0
  %v58 = vsel %vm50, %v30, 0
  %v61 = vsel %vm50, %v31, 0
  %v64 = vsel %vm50, %v32, 0
  %v67 = vsel %vm50, %v33, 0
  %v70 = vsel %vm50, %v34, 0
  %v73 = vsel %vm50, %v35, 0
  %v76 = vsel %vm50, %v36, 0
  %v79 = vsel %vm50, %v37, 0
  %v82 = vsel %vm50, %v38, 0
  %v85 = vsel %vm50, %v39, 0
  %v88 = vsel %vm50, %v40, 0
  %v91 = vsel %vm50, %v41, 0
  %v94 = vsel %vm50, %v42, 0
  %v97 = vsel %vm50, %v43, 0
  %99 = vmatpush.msra.mxu0 0.0
  %100 = vmatpush.msra.mxu0 0.0
  %101 = vmatpush.msra.mxu0 0.0
  %102 = vmatpush.msra.mxu0 0.0
  %103 = vmatpush.msra.mxu0 0.0
  %104 = vmatpush.msra.mxu0 0.0
  %105 = vmatpush.msra.mxu0 0.0
  %106 = vmatpush.msra.mxu0 0.0
  %107 = vmatpush.msra.mxu0 0.0
  %108 = vmatpush.msra.mxu0 0.0
  %109 = vmatpush.msra.mxu0 0.0
  %110 = vmatpush.msra.mxu0 0.0
  %111 = vmatpush.msra.mxu0 0.0
  %112 = vmatpush.msra.mxu0 0.0
  %113 = vmatpush.msra.mxu0 %v45
  %114 = vmatpush.msra.mxu0 %v44
  %115 = vmatmul.f32.gmra.mxu0 %v52
  %v116 = vpop.f32.mrf.mxu0
  %v117 = vadd.f32 %v48, %v116
  %118 = vmatmul.f32.gmra.mxu0 %v55
  %v119 = vpop.f32.mrf.mxu0
  %v120 = vadd.f32 %v48, %v119
  %121 = vmatmul.f32.gmra.mxu0 %v58
  %v122 = vpop.f32.mrf.mxu0
  %v123 = vadd.f32 %v48, %v122
  %124 = vmatmul.f32.gmra.mxu0 %v61
  %v125 = vpop.f32.mrf.mxu0
  %v126 = vadd.f32 %v48, %v125
  %127 = vmatmul.f32.gmra.mxu0 %v64
  %v128 = vpop.f32.mrf.mxu0
  %v129 = vadd.f32 %v48, %v128
  %130 = vmatmul.f32.gmra.mxu0 %v67
  %v131 = vpop.f32.mrf.mxu0
  %v132 = vadd.f32 %v48, %v131
  %133 = vmatmul.f32.gmra.mxu0 %v70
  %v134 = vpop.f32.mrf.mxu0
  %v135 = vadd.f32 %v48, %v134
  %136 = vmatmul.f32.gmra.mxu0 %v73
  %v137 = vpop.f32.mrf.mxu0
  %v138 = vadd.f32 %v48, %v137
  %139 = vmatmul.f32.gmra.mxu0 %v76
  %v140 = vpop.f32.mrf.mxu0
  %v141 = vadd.f32 %v48, %v140
  %142 = vmatmul.f32.gmra.mxu0 %v79
  %v143 = vpop.f32.mrf.mxu0
  %v144 = vadd.f32 %v48, %v143
  %145 = vmatmul.f32.gmra.mxu0 %v82
  %v146 = vpop.f32.mrf.mxu0
  %v147 = vadd.f32 %v48, %v146
  %148 = vmatmul.f32.gmra.mxu0 %v85
  %v149 = vpop.f32.mrf.mxu0
  %v150 = vadd.f32 %v48, %v149
  %151 = vmatmul.f32.gmra.mxu0 %v88
  %v152 = vpop.f32.mrf.mxu0
  %v153 = vadd.f32 %v48, %v152
  %154 = vmatmul.f32.gmra.mxu0 %v91
  %v155 = vpop.f32.mrf.mxu0
  %v156 = vadd.f32 %v48, %v155
  %157 = vmatmul.f32.gmra.mxu0 %v94
  %v158 = vpop.f32.mrf.mxu0
  %v159 = vadd.f32 %v48, %v158
  %160 = vmatmul.f32.gmra.mxu0 %v97
  %v161 = vpop.f32.mrf.mxu0
  %v162 = vadd.f32 %v48, %v161
  %163 = vdwg.mxu0
  %v164 = vmax.f32 %v117, 0.0
  %v165 = vmax.f32 %v120, 0.0
  %v166 = vmax.f32 %v123, 0.0
  %v167 = vmax.f32 %v126, 0.0
  %v168 = vmax.f32 %v129, 0.0
  %v169 = vmax.f32 %v132, 0.0
  %v170 = vmax.f32 %v135, 0.0
  %v171 = vmax.f32 %v138, 0.0
  %v172 = vmax.f32 %v141, 0.0
  %v173 = vmax.f32 %v144, 0.0
  %v174 = vmax.f32 %v147, 0.0
  %v175 = vmax.f32 %v150, 0.0
  %v176 = vmax.f32 %v153, 0.0
  %v177 = vmax.f32 %v156, 0.0
  %v178 = vmax.f32 %v159, 0.0
  %v179 = vmax.f32 %v162, 0.0
  %v180 = vld [vmem:[%s3] sm:$0xff]
  %v181 = vld [vmem:[%s3 + $0x8] sm:$0xff]
  %v182 = vld [vmem:[%s3 + $0x10] sm:$0xff]
  %v183 = vld [vmem:[%s3 + $0x18] sm:$0xff]
  %v184 = vld [vmem:[%s4] sm:$0x1]
  %v186 = vperm.slane %v184, 0
  %vm188 = vcmask 261120
  %v190 = vsel %vm188, %v164, 0
  %v193 = vsel %vm188, %v165, 0
  %v196 = vsel %vm188, %v166, 0
  %v199 = vsel %vm188, %v167, 0
  %v202 = vsel %vm188, %v168, 0
  %v205 = vsel %vm188, %v169, 0
  %v208 = vsel %vm188, %v170, 0
  %v211 = vsel %vm188, %v171, 0
  %v214 = vsel %vm188, %v172, 0
  %v217 = vsel %vm188, %v173, 0
  %v220 = vsel %vm188, %v174, 0
  %v223 = vsel %vm188, %v175, 0
  %v226 = vsel %vm188, %v176, 0
  %v229 = vsel %vm188, %v177, 0
  %v232 = vsel %vm188, %v178, 0
  %v235 = vsel %vm188, %v179, 0
  %237 = vmatpush.msra.mxu0 0.0
  %238 = vmatpush.msra.mxu0 0.0
  %239 = vmatpush.msra.mxu0 0.0
  %240 = vmatpush.msra.mxu0 0.0
  %241 = vmatpush.msra.mxu0 0.0
  %242 = vmatpush.msra.mxu0 0.0
  %243 = vmatpush.msra.mxu0 0.0
  %244 = vmatpush.msra.mxu0 0.0
  %245 = vmatpush.msra.mxu0 0.0
  %246 = vmatpush.msra.mxu0 0.0
  %247 = vmatpush.msra.mxu0 0.0
  %248 = vmatpush.msra.mxu0 0.0
  %249 = vmatpush.msra.mxu0 %v183
  %250 = vmatpush.msra.mxu0 %v182
  %251 = vmatpush.msra.mxu0 %v181
  %252 = vmatpush.msra.mxu0 %v180
  %253 = vmatmul.f32.gmra.mxu0 %v190
  %v254 = vpop.f32.mrf.mxu0
  %v255 = vadd.f32 %v186, %v254
  %256 = vmatmul.f32.gmra.mxu0 %v193
  %v257 = vpop.f32.mrf.mxu0
  %v258 = vadd.f32 %v186, %v257
  %259 = vmatmul.f32.gmra.mxu0 %v196
  %v260 = vpop.f32.mrf.mxu0
  %v261 = vadd.f32 %v186, %v260
  %262 = vmatmul.f32.gmra.mxu0 %v199
  %v263 = vpop.f32.mrf.mxu0
  %v264 = vadd.f32 %v186, %v263
  %265 = vmatmul.f32.gmra.mxu0 %v202
  %v266 = vpop.f32.mrf.mxu0
  %v267 = vadd.f32 %v186, %v266
  %268 = vmatmul.f32.gmra.mxu0 %v205
  %v269 = vpop.f32.mrf.mxu0
  %v270 = vadd.f32 %v186, %v269
  %271 = vmatmul.f32.gmra.mxu0 %v208
  %v272 = vpop.f32.mrf.mxu0
  %v273 = vadd.f32 %v186, %v272
  %274 = vmatmul.f32.gmra.mxu0 %v211
  %v275 = vpop.f32.mrf.mxu0
  %v276 = vadd.f32 %v186, %v275
  %277 = vmatmul.f32.gmra.mxu0 %v214
  %v278 = vpop.f32.mrf.mxu0
  %v279 = vadd.f32 %v186, %v278
  %280 = vmatmul.f32.gmra.mxu0 %v217
  %v281 = vpop.f32.mrf.mxu0
  %v282 = vadd.f32 %v186, %v281
  %283 = vmatmul.f32.gmra.mxu0 %v220
  %v284 = vpop.f32.mrf.mxu0
  %v285 = vadd.f32 %v186, %v284
  %286 = vmatmul.f32.gmra.mxu0 %v223
  %v287 = vpop.f32.mrf.mxu0
  %v288 = vadd.f32 %v186, %v287
  %289 = vmatmul.f32.gmra.mxu0 %v226
  %v290 = vpop.f32.mrf.mxu0
  %v291 = vadd.f32 %v186, %v290
  %292 = vmatmul.f32.gmra.mxu0 %v229
  %v293 = vpop.f32.mrf.mxu0
  %v294 = vadd.f32 %v186, %v293
  %295 = vmatmul.f32.gmra.mxu0 %v232
  %v296 = vpop.f32.mrf.mxu0
  %v297 = vadd.f32 %v186, %v296
  %298 = vmatmul.f32.gmra.mxu0 %v235
  %v299 = vpop.f32.mrf.mxu0
  %v300 = vadd.f32 %v186, %v299
  %301 = vdwg.mxu0
  %v302 = vmax.f32 %v255, 0.0
  %v303 = vmax.f32 %v258, 0.0
  %v304 = vmax.f32 %v261, 0.0
  %v305 = vmax.f32 %v264, 0.0
  %v306 = vmax.f32 %v267, 0.0
  %v307 = vmax.f32 %v270, 0.0
  %v308 = vmax.f32 %v273, 0.0
  %v309 = vmax.f32 %v276, 0.0
  %v310 = vmax.f32 %v279, 0.0
  %v311 = vmax.f32 %v282, 0.0
  %v312 = vmax.f32 %v285, 0.0
  %v313 = vmax.f32 %v288, 0.0
  %v314 = vmax.f32 %v291, 0.0
  %v315 = vmax.f32 %v294, 0.0
  %v316 = vmax.f32 %v297, 0.0
  %v317 = vmax.f32 %v300, 0.0
  %v318 = vld [vmem:[%s5] sm:$0x1]
  %v319 = vld [vmem:[#allocation2] sm:$0x1]
  %321 = vset.pattern.permute.xlu0 0
  %322 = vperm.xlu0 %321, %v319
  %v323 = vpop.permute.xlu0 %322
  %v325 = vperm.slane %v323, 0
  %v327 = vsel %vm188, %v318, 0
  %v330 = vsel %vm188, %v302, 0
  %v333 = vsel %vm188, %v303, 0
  %v336 = vsel %vm188, %v304, 0
  %v339 = vsel %vm188, %v305, 0
  %v342 = vsel %vm188, %v306, 0
  %v345 = vsel %vm188, %v307, 0
  %v348 = vsel %vm188, %v308, 0
  %v351 = vsel %vm188, %v309, 0
  %v354 = vsel %vm188, %v310, 0
  %v357 = vsel %vm188, %v311, 0
  %v360 = vsel %vm188, %v312, 0
  %v363 = vsel %vm188, %v313, 0
  %v366 = vsel %vm188, %v314, 0
  %v369 = vsel %vm188, %v315, 0
  %v372 = vsel %vm188, %v316, 0
  %v375 = vsel %vm188, %v317, 0
  %377 = vmatpush.xpose.msra.mxu0 %v375
  %378 = vmatpush.xpose.msra.mxu0 %v372
  %379 = vmatpush.xpose.msra.mxu0 %v369
  %380 = vmatpush.xpose.msra.mxu0 %v366
  %381 = vmatpush.xpose.msra.mxu0 %v363
  %382 = vmatpush.xpose.msra.mxu0 %v360
  %383 = vmatpush.xpose.msra.mxu0 %v357
  %384 = vmatpush.xpose.msra.mxu0 %v354
  %385 = vmatpush.xpose.msra.mxu0 %v351
  %386 = vmatpush.xpose.msra.mxu0 %v348
  %387 = vmatpush.xpose.msra.mxu0 %v345
  %388 = vmatpush.xpose.msra.mxu0 %v342
  %389 = vmatpush.xpose.msra.mxu0 %v339
  %390 = vmatpush.xpose.msra.mxu0 %v336
  %391 = vmatpush.xpose.msra.mxu0 %v333
  %392 = vmatpush.xpose.msra.mxu0 %v330
  %393 = vmatmul.f32.gmra.mxu0 %v327
  %v394 = vpop.f32.mrf.mxu0
  %v395 = vadd.f32 %v325, %v394
  %396 = vdwg.mxu0
  %397 = vst [vmem:[%s7] sm:$0x1] %v395
  // Predicated region
  $region30: #{regression_simple_mlp.1} parent=0 // pred_check
    _
  $region31: #{regression_simple_mlp.1} parent=0 // pred_check_branch
    %399 = sbr.rel (0) target = $region33
  $region32: #{regression_simple_mlp.1} parent=0 // pred_region
    _
  $region33: #{regression_simple_mlp.1} parent=0 // pred_fallthru
    _
  // Predicated region
  $region34: #{regression_simple_mlp.1} parent=0 // pred_check
    _
  $region35: #{regression_simple_mlp.1} parent=0 // pred_check_branch
    %401 = sbr.rel (0) target = $region37
  $region36: #{regression_simple_mlp.1} parent=0 // pred_region
    _
  $region37: #{regression_simple_mlp.1} parent=0 // pred_fallthru
    _

</llo_original>
